<compile_context>
chip_gen: v7x
topology: tpu7x:2x2x1
jax: 0.10.0
libtpu: 0.0.40
codegen_flags: <defaults>
</compile_context>

<pallas_src>
import functools
import numpy as np
import jax
import jax.numpy as jnp
from jax import lax
from jax.experimental import pallas as pl
from jax.experimental.pallas import tpu as pltpu

_LOG4 = float(np.log(4.0))


def _vqvae_kernel(fb_ref, et_ref, out_ref, *, s_bit):
    fb = fb_ref[...]        # (tb, N, D)  feedback grouped into vq vectors
    eT = et_ref[...]        # (D, K)      codebook, transposed (lane-dense in K)
    tb, N, D = fb.shape
    K = eT.shape[1]

    # ---- per-row L2 norm + FloatBiter straight-through quantization of scale ----
    ssq = jnp.sum(fb * fb, axis=(1, 2), keepdims=True)            # (tb,1,1)
    scale = jnp.sqrt(ssq)
    xc = jnp.clip(scale + 1.0, 1.0, 16.0)
    y = jnp.log(xc) / _LOG4                                       # log4(clamp(scale+1))
    q = jnp.zeros_like(y)
    for i in range(s_bit):                                        # static unroll, scalar-ish VPU work
        w = float(2.0 ** i)
        t = jnp.floor(y * w)
        bit = t - 2.0 * jnp.floor(t * 0.5)                        # == floor(y*2^i) mod 2
        q = q + bit / w
    scale_q = jnp.exp(q * _LOG4) - 1.0                            # 4**q - 1

    # ---- normalize + VQ nearest-neighbour search (K on lanes, VPU/XLU only) ----
    x = fb / scale                                                # (tb,N,D)
    dist = None
    for d in range(D):                                            # D is tiny & static
        xd = x[:, :, d:d + 1]                                     # (tb,N,1)
        ed = eT[d:d + 1, :][None, :, :]                           # (1,1,K)
        diff = xd - ed
        sq = diff * diff
        dist = sq if dist is None else dist + sq
    dist = dist * (1.0 / D)                                       # mean over vq_dim

    min_d = jnp.min(dist, axis=2, keepdims=True)                  # (tb,N,1)
    lane = lax.broadcasted_iota(jnp.int32, (tb, N, K), 2).astype(jnp.float32)
    cand = jnp.where(dist <= min_d, lane, float(K))
    ind = jnp.min(cand, axis=2, keepdims=True)                    # first argmin, (tb,N,1)
    onehot = (lane == ind).astype(jnp.float32)                    # (tb,N,K)

    # gather chosen code rows via one-hot reduce, rescale, write merged output slab
    for d in range(D):
        ed = eT[d:d + 1, :][None, :, :]                           # (1,1,K)
        qd = jnp.sum(onehot * ed, axis=2, keepdims=True)          # (tb,N,1)
        out_ref[:, :, d:d + 1] = qd * scale_q
    out_ref[:, :, D:D + 1] = min_d


def vqvae_pallas(feedback, embed, *, s_bit=8, batch_tile=None):
    """Returns (feedback_Q, loss1, loss2) — forward values of VQVAE.forward."""
    batch = feedback.shape[0]
    fb2 = feedback.reshape(batch, -1)
    F = fb2.shape[1]
    K, D = embed.shape
    assert F % D == 0, "feedback feature size must be divisible by vq_dim"
    N = F // D

    if batch_tile is None:
        batch_tile = max(1, min(8, batch // 2))
    while batch % batch_tile:
        batch_tile -= 1
    tb = batch_tile

    # wrapper-side layout plumbing (cheap XLA ops)
    fb3 = fb2.reshape(batch, N, D)        # group into vq vectors
    eT = embed.T                          # (D, K): lane-dense codebook

    out = pl.pallas_call(
        functools.partial(_vqvae_kernel, s_bit=s_bit),
        out_shape=jax.ShapeDtypeStruct((batch, N, D + 1), jnp.float32),
        grid=(batch // tb,),
        in_specs=[
            pl.BlockSpec((tb, N, D), lambda b: (b, 0, 0)),        # feedback tile
            pl.BlockSpec((D, K), lambda b: (0, 0)),               # full codebook
        ],
        out_specs=pl.BlockSpec((tb, N, D + 1), lambda b: (b, 0, 0)),
        compiler_params=pltpu.CompilerParams(
            dimension_semantics=("parallel",)),
    )(fb3, eT)

    feedback_Q = out[..., :D].reshape(feedback.shape)
    min_dist = out[..., D]                                        # (batch, N)
    loss = jnp.mean(min_dist)
    # (feedback_Q - feedback).detach() + feedback has forward value == feedback_Q;
    # the .detach() split is a gradient-only (straight-through) construct.
    return feedback_Q, loss, loss


# --------------------- pure-JAX reference (transcribes PyTorch) ---------------------
def _floatbiter_ref(x, b):
    db = (2.0 ** np.arange(b)).astype(np.float32)                 # dot_base
    xc = jnp.clip(x + 1.0, 1.0, 16.0)[..., None]
    y = jnp.log(xc) / _LOG4
    bits = jnp.floor(y * db).astype(jnp.int32) % 2
    x1 = jnp.sum(bits.astype(jnp.float32) / db, axis=-1)
    return jnp.power(4.0, x1) - 1.0                               # forward value of STE


def vqvae_ref(feedback, embed, s_bit):
    b = feedback.shape[0]
    fb = feedback.reshape(b, -1)
    K, D = embed.shape
    scale = jnp.linalg.norm(fb, axis=-1)
    scale_q = _floatbiter_ref(scale, s_bit)
    fn = (fb / scale[:, None]).reshape(b, -1, D)                  # (b,N,D)
    dist = jnp.mean((fn[:, :, None, :] - embed[None, None, :, :]) ** 2, axis=-1)
    ind = jnp.argmin(dist, axis=-1)                               # (b,N)
    fqn = embed[ind]                                              # (b,N,D)
    loss1 = jnp.mean(jnp.mean((fqn - fn) ** 2, axis=-1))
    loss2 = loss1
    fq = (fqn.reshape(b, -1) * scale_q[:, None]).reshape(feedback.shape)
    return fq, loss1, loss2


if __name__ == "__main__":
    # Shapes implied by the module defaults: vq_b=8 -> K=256 codes, vq_dim=2,
    # s_bit=8, feedback_feature=64.
    vq_b, vq_dim, s_bit, feedback_feature = 8, 2, 8, 64
    batch = 2
    K = 2 ** vq_b

    key = jax.random.PRNGKey(0)
    k_embed, k_fb = jax.random.split(key)
    # embed = randn(K, vq_dim) / sqrt(feedback_feature)   (reset_embed)
    embed = jax.random.normal(k_embed, (K, vq_dim), jnp.float32) / np.sqrt(feedback_feature)
    feedback = jax.random.normal(k_fb, (batch, feedback_feature), jnp.float32)

    out, l1, l2 = vqvae_pallas(feedback, embed, s_bit=s_bit)
    out, l1, l2 = jax.block_until_ready((out, l1, l2))

    ref_out, ref_l1, ref_l2 = vqvae_ref(feedback, embed, s_bit)
    np.testing.assert_allclose(np.asarray(out), np.asarray(ref_out), rtol=1e-4, atol=1e-5)
    np.testing.assert_allclose(float(l1), float(ref_l1), rtol=1e-4, atol=1e-6)
    np.testing.assert_allclose(float(l2), float(ref_l2), rtol=1e-4, atol=1e-6)

    print("KERNEL_OK")
</pallas_src>

<mosaic_0001>
module attributes {stable_mosaic.version = 11 : i64} {
  func.func @_vqvae_kernel(%arg0: i32, %arg1: memref<1x32x2xf32, #tpu.memory_space<vmem>>, %arg2: memref<2x256xf32, #tpu.memory_space<vmem>>, %arg3: memref<1x32x3xf32, #tpu.memory_space<vmem>>) attributes {dimension_semantics = [#tpu.dimension_semantics<parallel>], iteration_bounds = array<i64: 2>, scalar_prefetch = 0 : i64, scratch_operands = 0 : i64, tpu.core_type = #tpu.core_type<tc>, window_params = [{transform_indices = @transform_0, window_bounds = array<i64: 1, 32, 2>}, {pipeline_mode = #tpu.pipeline_mode<synchronous>, transform_indices = @transform_1, window_bounds = array<i64: 2, 256>}, {transform_indices = @transform_2, window_bounds = array<i64: 1, 32, 3>}]} {
    %c0 = arith.constant 0 : index
    %c0_0 = arith.constant 0 : index
    %c0_1 = arith.constant 0 : index
    %0 = vector.load %arg1[%c0, %c0_0, %c0_1] : memref<1x32x2xf32, #tpu.memory_space<vmem>>, vector<1x32x2xf32>
    %c0_2 = arith.constant 0 : index
    %c0_3 = arith.constant 0 : index
    %1 = vector.load %arg2[%c0_2, %c0_3] : memref<2x256xf32, #tpu.memory_space<vmem>>, vector<2x256xf32>
    %2 = arith.mulf %0, %0 : vector<1x32x2xf32>
    %cst = arith.constant dense<0.000000e+00> : vector<1xf32>
    %3 = vector.multi_reduction <add>, %2, %cst [1, 2] : vector<1x32x2xf32> to vector<1xf32>
    %4 = vector.shape_cast %3 : vector<1xf32> to vector<1x1x1xf32>
    %5 = math.sqrt %4 : vector<1x1x1xf32>
    %cst_4 = arith.constant 1.000000e+00 : f32
    %6 = vector.broadcast %cst_4 : f32 to vector<1x1x1xf32>
    %7 = arith.addf %5, %6 : vector<1x1x1xf32>
    %cst_5 = arith.constant 1.000000e+00 : f32
    %cst_6 = arith.constant 1.600000e+01 : f32
    %8 = vector.broadcast %cst_5 : f32 to vector<1x1x1xf32>
    %9 = arith.maximumf %8, %7 : vector<1x1x1xf32>
    %10 = vector.broadcast %cst_6 : f32 to vector<1x1x1xf32>
    %11 = arith.minimumf %10, %9 : vector<1x1x1xf32>
    %12 = math.log %11 : vector<1x1x1xf32>
    %cst_7 = arith.constant 1.38629436 : f32
    %13 = vector.broadcast %cst_7 : f32 to vector<1x1x1xf32>
    %14 = arith.divf %12, %13 : vector<1x1x1xf32>
    %cst_8 = arith.constant 0.000000e+00 : f32
    %15 = vector.broadcast %cst_8 : f32 to vector<1x1x1xf32>
    %cst_9 = arith.constant 1.000000e+00 : f32
    %16 = vector.broadcast %cst_9 : f32 to vector<1x1x1xf32>
    %17 = arith.mulf %14, %16 : vector<1x1x1xf32>
    %18 = math.floor %17 : vector<1x1x1xf32>
    %cst_10 = arith.constant 5.000000e-01 : f32
    %19 = vector.broadcast %cst_10 : f32 to vector<1x1x1xf32>
    %20 = arith.mulf %18, %19 : vector<1x1x1xf32>
    %21 = math.floor %20 : vector<1x1x1xf32>
    %cst_11 = arith.constant 2.000000e+00 : f32
    %22 = vector.broadcast %cst_11 : f32 to vector<1x1x1xf32>
    %23 = arith.mulf %22, %21 : vector<1x1x1xf32>
    %24 = arith.subf %18, %23 : vector<1x1x1xf32>
    %cst_12 = arith.constant 1.000000e+00 : f32
    %25 = vector.broadcast %cst_12 : f32 to vector<1x1x1xf32>
    %26 = arith.divf %24, %25 : vector<1x1x1xf32>
    %27 = arith.addf %15, %26 : vector<1x1x1xf32>
    %cst_13 = arith.constant 2.000000e+00 : f32
    %28 = vector.broadcast %cst_13 : f32 to vector<1x1x1xf32>
    %29 = arith.mulf %14, %28 : vector<1x1x1xf32>
    %30 = math.floor %29 : vector<1x1x1xf32>
    %cst_14 = arith.constant 5.000000e-01 : f32
    %31 = vector.broadcast %cst_14 : f32 to vector<1x1x1xf32>
    %32 = arith.mulf %30, %31 : vector<1x1x1xf32>
    %33 = math.floor %32 : vector<1x1x1xf32>
    %cst_15 = arith.constant 2.000000e+00 : f32
    %34 = vector.broadcast %cst_15 : f32 to vector<1x1x1xf32>
    %35 = arith.mulf %34, %33 : vector<1x1x1xf32>
    %36 = arith.subf %30, %35 : vector<1x1x1xf32>
    %cst_16 = arith.constant 2.000000e+00 : f32
    %37 = vector.broadcast %cst_16 : f32 to vector<1x1x1xf32>
    %38 = arith.divf %36, %37 : vector<1x1x1xf32>
    %39 = arith.addf %27, %38 : vector<1x1x1xf32>
    %cst_17 = arith.constant 4.000000e+00 : f32
    %40 = vector.broadcast %cst_17 : f32 to vector<1x1x1xf32>
    %41 = arith.mulf %14, %40 : vector<1x1x1xf32>
    %42 = math.floor %41 : vector<1x1x1xf32>
    %cst_18 = arith.constant 5.000000e-01 : f32
    %43 = vector.broadcast %cst_18 : f32 to vector<1x1x1xf32>
    %44 = arith.mulf %42, %43 : vector<1x1x1xf32>
    %45 = math.floor %44 : vector<1x1x1xf32>
    %cst_19 = arith.constant 2.000000e+00 : f32
    %46 = vector.broadcast %cst_19 : f32 to vector<1x1x1xf32>
    %47 = arith.mulf %46, %45 : vector<1x1x1xf32>
    %48 = arith.subf %42, %47 : vector<1x1x1xf32>
    %cst_20 = arith.constant 4.000000e+00 : f32
    %49 = vector.broadcast %cst_20 : f32 to vector<1x1x1xf32>
    %50 = arith.divf %48, %49 : vector<1x1x1xf32>
    %51 = arith.addf %39, %50 : vector<1x1x1xf32>
    %cst_21 = arith.constant 8.000000e+00 : f32
    %52 = vector.broadcast %cst_21 : f32 to vector<1x1x1xf32>
    %53 = arith.mulf %14, %52 : vector<1x1x1xf32>
    %54 = math.floor %53 : vector<1x1x1xf32>
    %cst_22 = arith.constant 5.000000e-01 : f32
    %55 = vector.broadcast %cst_22 : f32 to vector<1x1x1xf32>
    %56 = arith.mulf %54, %55 : vector<1x1x1xf32>
    %57 = math.floor %56 : vector<1x1x1xf32>
    %cst_23 = arith.constant 2.000000e+00 : f32
    %58 = vector.broadcast %cst_23 : f32 to vector<1x1x1xf32>
    %59 = arith.mulf %58, %57 : vector<1x1x1xf32>
    %60 = arith.subf %54, %59 : vector<1x1x1xf32>
    %cst_24 = arith.constant 8.000000e+00 : f32
    %61 = vector.broadcast %cst_24 : f32 to vector<1x1x1xf32>
    %62 = arith.divf %60, %61 : vector<1x1x1xf32>
    %63 = arith.addf %51, %62 : vector<1x1x1xf32>
    %cst_25 = arith.constant 1.600000e+01 : f32
    %64 = vector.broadcast %cst_25 : f32 to vector<1x1x1xf32>
    %65 = arith.mulf %14, %64 : vector<1x1x1xf32>
    %66 = math.floor %65 : vector<1x1x1xf32>
    %cst_26 = arith.constant 5.000000e-01 : f32
    %67 = vector.broadcast %cst_26 : f32 to vector<1x1x1xf32>
    %68 = arith.mulf %66, %67 : vector<1x1x1xf32>
    %69 = math.floor %68 : vector<1x1x1xf32>
    %cst_27 = arith.constant 2.000000e+00 : f32
    %70 = vector.broadcast %cst_27 : f32 to vector<1x1x1xf32>
    %71 = arith.mulf %70, %69 : vector<1x1x1xf32>
    %72 = arith.subf %66, %71 : vector<1x1x1xf32>
    %cst_28 = arith.constant 1.600000e+01 : f32
    %73 = vector.broadcast %cst_28 : f32 to vector<1x1x1xf32>
    %74 = arith.divf %72, %73 : vector<1x1x1xf32>
    %75 = arith.addf %63, %74 : vector<1x1x1xf32>
    %cst_29 = arith.constant 3.200000e+01 : f32
    %76 = vector.broadcast %cst_29 : f32 to vector<1x1x1xf32>
    %77 = arith.mulf %14, %76 : vector<1x1x1xf32>
    %78 = math.floor %77 : vector<1x1x1xf32>
    %cst_30 = arith.constant 5.000000e-01 : f32
    %79 = vector.broadcast %cst_30 : f32 to vector<1x1x1xf32>
    %80 = arith.mulf %78, %79 : vector<1x1x1xf32>
    %81 = math.floor %80 : vector<1x1x1xf32>
    %cst_31 = arith.constant 2.000000e+00 : f32
    %82 = vector.broadcast %cst_31 : f32 to vector<1x1x1xf32>
    %83 = arith.mulf %82, %81 : vector<1x1x1xf32>
    %84 = arith.subf %78, %83 : vector<1x1x1xf32>
    %cst_32 = arith.constant 3.200000e+01 : f32
    %85 = vector.broadcast %cst_32 : f32 to vector<1x1x1xf32>
    %86 = arith.divf %84, %85 : vector<1x1x1xf32>
    %87 = arith.addf %75, %86 : vector<1x1x1xf32>
    %cst_33 = arith.constant 6.400000e+01 : f32
    %88 = vector.broadcast %cst_33 : f32 to vector<1x1x1xf32>
    %89 = arith.mulf %14, %88 : vector<1x1x1xf32>
    %90 = math.floor %89 : vector<1x1x1xf32>
    %cst_34 = arith.constant 5.000000e-01 : f32
    %91 = vector.broadcast %cst_34 : f32 to vector<1x1x1xf32>
    %92 = arith.mulf %90, %91 : vector<1x1x1xf32>
    %93 = math.floor %92 : vector<1x1x1xf32>
    %cst_35 = arith.constant 2.000000e+00 : f32
    %94 = vector.broadcast %cst_35 : f32 to vector<1x1x1xf32>
    %95 = arith.mulf %94, %93 : vector<1x1x1xf32>
    %96 = arith.subf %90, %95 : vector<1x1x1xf32>
    %cst_36 = arith.constant 6.400000e+01 : f32
    %97 = vector.broadcast %cst_36 : f32 to vector<1x1x1xf32>
    %98 = arith.divf %96, %97 : vector<1x1x1xf32>
    %99 = arith.addf %87, %98 : vector<1x1x1xf32>
    %cst_37 = arith.constant 1.280000e+02 : f32
    %100 = vector.broadcast %cst_37 : f32 to vector<1x1x1xf32>
    %101 = arith.mulf %14, %100 : vector<1x1x1xf32>
    %102 = math.floor %101 : vector<1x1x1xf32>
    %cst_38 = arith.constant 5.000000e-01 : f32
    %103 = vector.broadcast %cst_38 : f32 to vector<1x1x1xf32>
    %104 = arith.mulf %102, %103 : vector<1x1x1xf32>
    %105 = math.floor %104 : vector<1x1x1xf32>
    %cst_39 = arith.constant 2.000000e+00 : f32
    %106 = vector.broadcast %cst_39 : f32 to vector<1x1x1xf32>
    %107 = arith.mulf %106, %105 : vector<1x1x1xf32>
    %108 = arith.subf %102, %107 : vector<1x1x1xf32>
    %cst_40 = arith.constant 1.280000e+02 : f32
    %109 = vector.broadcast %cst_40 : f32 to vector<1x1x1xf32>
    %110 = arith.divf %108, %109 : vector<1x1x1xf32>
    %111 = arith.addf %99, %110 : vector<1x1x1xf32>
    %cst_41 = arith.constant 1.38629436 : f32
    %112 = vector.broadcast %cst_41 : f32 to vector<1x1x1xf32>
    %113 = arith.mulf %111, %112 : vector<1x1x1xf32>
    %114 = math.exp %113 : vector<1x1x1xf32>
    %cst_42 = arith.constant 1.000000e+00 : f32
    %115 = vector.broadcast %cst_42 : f32 to vector<1x1x1xf32>
    %116 = arith.subf %114, %115 : vector<1x1x1xf32>
    %117 = vector.broadcast %5 : vector<1x1x1xf32> to vector<1x32x2xf32>
    %118 = arith.divf %0, %117 : vector<1x32x2xf32>
    %119 = vector.extract_strided_slice %118 {offsets = [0, 0, 0], sizes = [1, 32, 1], strides = [1, 1, 1]} : vector<1x32x2xf32> to vector<1x32x1xf32>
    %120 = vector.extract_strided_slice %1 {offsets = [0, 0], sizes = [1, 256], strides = [1, 1]} : vector<2x256xf32> to vector<1x256xf32>
    %121 = vector.shape_cast %120 : vector<1x256xf32> to vector<1x1x256xf32>
    %122 = vector.broadcast %119 : vector<1x32x1xf32> to vector<1x32x256xf32>
    %123 = vector.broadcast %121 : vector<1x1x256xf32> to vector<1x32x256xf32>
    %124 = arith.subf %122, %123 : vector<1x32x256xf32>
    %125 = arith.mulf %124, %124 : vector<1x32x256xf32>
    %126 = vector.extract_strided_slice %118 {offsets = [0, 0, 1], sizes = [1, 32, 1], strides = [1, 1, 1]} : vector<1x32x2xf32> to vector<1x32x1xf32>
    %127 = vector.extract_strided_slice %1 {offsets = [1, 0], sizes = [1, 256], strides = [1, 1]} : vector<2x256xf32> to vector<1x256xf32>
    %128 = vector.shape_cast %127 : vector<1x256xf32> to vector<1x1x256xf32>
    %129 = vector.broadcast %126 : vector<1x32x1xf32> to vector<1x32x256xf32>
    %130 = vector.broadcast %128 : vector<1x1x256xf32> to vector<1x32x256xf32>
    %131 = arith.subf %129, %130 : vector<1x32x256xf32>
    %132 = arith.mulf %131, %131 : vector<1x32x256xf32>
    %133 = arith.addf %125, %132 : vector<1x32x256xf32>
    %cst_43 = arith.constant 5.000000e-01 : f32
    %134 = vector.broadcast %cst_43 : f32 to vector<1x32x256xf32>
    %135 = arith.mulf %133, %134 : vector<1x32x256xf32>
    %cst_44 = arith.constant dense<0x7F800000> : vector<1x32xf32>
    %136 = vector.multi_reduction <minimumf>, %135, %cst_44 [2] : vector<1x32x256xf32> to vector<1x32xf32>
    %137 = vector.shape_cast %136 : vector<1x32xf32> to vector<1x32x1xf32>
    %138 = tpu.iota {dimensions = array<i32: 2>} : vector<1x32x256xi32>
    %139 = arith.sitofp %138 : vector<1x32x256xi32> to vector<1x32x256xf32>
    %140 = vector.broadcast %137 : vector<1x32x1xf32> to vector<1x32x256xf32>
    %141 = arith.cmpf ole, %135, %140 : vector<1x32x256xf32>
    %cst_45 = arith.constant 2.560000e+02 : f32
    %142 = vector.broadcast %cst_45 : f32 to vector<1x32x256xf32>
    %143 = arith.select %141, %139, %142 : vector<1x32x256xi1>, vector<1x32x256xf32>
    %cst_46 = arith.constant dense<0x7F800000> : vector<1x32xf32>
    %144 = vector.multi_reduction <minimumf>, %143, %cst_46 [2] : vector<1x32x256xf32> to vector<1x32xf32>
    %145 = vector.shape_cast %144 : vector<1x32xf32> to vector<1x32x1xf32>
    %146 = vector.broadcast %145 : vector<1x32x1xf32> to vector<1x32x256xf32>
    %147 = arith.cmpf oeq, %139, %146 : vector<1x32x256xf32>
    %148 = arith.extui %147 : vector<1x32x256xi1> to vector<1x32x256xi32>
    %149 = arith.sitofp %148 : vector<1x32x256xi32> to vector<1x32x256xf32>
    %150 = vector.extract_strided_slice %1 {offsets = [0, 0], sizes = [1, 256], strides = [1, 1]} : vector<2x256xf32> to vector<1x256xf32>
    %151 = vector.shape_cast %150 : vector<1x256xf32> to vector<1x1x256xf32>
    %152 = vector.broadcast %151 : vector<1x1x256xf32> to vector<1x32x256xf32>
    %153 = arith.mulf %149, %152 : vector<1x32x256xf32>
    %cst_47 = arith.constant dense<0.000000e+00> : vector<1x32xf32>
    %154 = vector.multi_reduction <add>, %153, %cst_47 [2] : vector<1x32x256xf32> to vector<1x32xf32>
    %155 = vector.shape_cast %154 : vector<1x32xf32> to vector<1x32x1xf32>
    %156 = vector.broadcast %116 : vector<1x1x1xf32> to vector<1x32x1xf32>
    %157 = arith.mulf %155, %156 : vector<1x32x1xf32>
    %c0_48 = arith.constant 0 : index
    %c0_49 = arith.constant 0 : index
    %c0_50 = arith.constant 0 : index
    %158 = vector.load %arg3[%c0_48, %c0_49, %c0_50] : memref<1x32x3xf32, #tpu.memory_space<vmem>>, vector<1x32x1xf32>
    tpu.vector_store %arg3[%c0_48, %c0_49, %c0_50], %157 {strides = array<i32>} : memref<1x32x3xf32, #tpu.memory_space<vmem>>, vector<1x32x1xf32>,
    %159 = vector.extract_strided_slice %1 {offsets = [1, 0], sizes = [1, 256], strides = [1, 1]} : vector<2x256xf32> to vector<1x256xf32>
    %160 = vector.shape_cast %159 : vector<1x256xf32> to vector<1x1x256xf32>
    %161 = vector.broadcast %160 : vector<1x1x256xf32> to vector<1x32x256xf32>
    %162 = arith.mulf %149, %161 : vector<1x32x256xf32>
    %cst_51 = arith.constant dense<0.000000e+00> : vector<1x32xf32>
    %163 = vector.multi_reduction <add>, %162, %cst_51 [2] : vector<1x32x256xf32> to vector<1x32xf32>
    %164 = vector.shape_cast %163 : vector<1x32xf32> to vector<1x32x1xf32>
    %165 = vector.broadcast %116 : vector<1x1x1xf32> to vector<1x32x1xf32>
    %166 = arith.mulf %164, %165 : vector<1x32x1xf32>
    %c0_52 = arith.constant 0 : index
    %c0_53 = arith.constant 0 : index
    %c1 = arith.constant 1 : index
    %167 = vector.load %arg3[%c0_52, %c0_53, %c1] : memref<1x32x3xf32, #tpu.memory_space<vmem>>, vector<1x32x1xf32>
    tpu.vector_store %arg3[%c0_52, %c0_53, %c1], %166 {strides = array<i32>} : memref<1x32x3xf32, #tpu.memory_space<vmem>>, vector<1x32x1xf32>,
    %c0_54 = arith.constant 0 : index
    %c0_55 = arith.constant 0 : index
    %c2 = arith.constant 2 : index
    %168 = vector.load %arg3[%c0_54, %c0_55, %c2] : memref<1x32x3xf32, #tpu.memory_space<vmem>>, vector<1x32x1xf32>
    tpu.vector_store %arg3[%c0_54, %c0_55, %c2], %137 {strides = array<i32>} : memref<1x32x3xf32, #tpu.memory_space<vmem>>, vector<1x32x1xf32>,
    return
  }
  func.func @transform_0(%arg0: i32) -> (i32, i32, i32) {
    %c0_i32 = arith.constant 0 : i32
    %c0_i32_0 = arith.constant 0 : i32
    %c0_i32_1 = arith.constant 0 : i32
    return %arg0, %c0_i32, %c0_i32_0 : i32, i32, i32
  }
  func.func @transform_1(%arg0: i32) -> (i32, i32) {
    %c0_i32 = arith.constant 0 : i32
    %c0_i32_0 = arith.constant 0 : i32
    %c0_i32_1 = arith.constant 0 : i32
    return %c0_i32, %c0_i32_0 : i32, i32
  }
  func.func @transform_2(%arg0: i32) -> (i32, i32, i32) {
    %c0_i32 = arith.constant 0 : i32
    %c0_i32_0 = arith.constant 0 : i32
    %c0_i32_1 = arith.constant 0 : i32
    return %arg0, %c0_i32, %c0_i32_0 : i32, i32, i32
  }
}

</mosaic_0001>

<llo_original>
// kernel: tpu_custom_call.1
$region0: #{tpu_custom_call.1}
  #allocation0 [shape = 'u32[]', space=smem, size = 0x4, offset = 0x4, fixed_abs, tag = 'smem constant byte address 0x4 - core index']
  #allocation1 [shape = 'u32[144,128]{1,0:T(1,128)}', space=vmem, size = 0x12000, scoped, tag = 'internal scratch']
  %s0 = inlined_call_operand.vmem [shape: f32[2,32,2], index: 0, kind: input, shape index: {}]
  %s1 = inlined_call_operand.vmem [shape: f32[2,256], index: 1, kind: input, shape index: {}]
  %s2 = inlined_call_operand.vmem [shape: f32[2,32,3], index: 2, kind: output, shape index: {}]
  %s3 = sld [smem:[#allocation0]]
  $region41: #{tpu_custom_call.1} parent=0
    _
  %s5 = ssub.s32 1, %s3
  %s6 = scalar_select 0, %s5, %s3
  loop: start=0, step=1, limit=4
  $region2: #{tpu_custom_call.1} parent=0 // loop_pre_header
    _
  $region3: #{tpu_custom_call.1} parent=0 // loop_header
    %s8 = sphi 0, %s12
    %p9 = scmp.ge.s32.totalorder %s8, 4
    %s18 = sphi 0, %s20
    %s21 = sphi 0, %s18
    %s22 = sphi 0, %s21
    %s38 = sphi 0, %s22
    %s42 = sphi 0, %s42
    %s44 = sphi 0, %s42
    %s45 = sphi 0, %s44
    %s59 = sphi 0, %s45
    %s65 = sphi 0, %s67
    %s68 = sphi 0, %s65
    %s69 = sphi 0, %s68
    %s85 = sphi 0, %s69
  $region4: #{tpu_custom_call.1} parent=0 // loop_header_branch
    %11 = sbr.rel (%p9) target = $region8
  $region5: #{tpu_custom_call.1} parent=0 // loop_body
    %s13 = ssub.s32 %s8, 1
    %s14 = ssub.s32 %s8, 2
    %s15 = sadd.s32 %s8, 1
    %s16 = ssub.s32 %s8, %s15
    %p17 = scmp.eq.s32.totalorder %s16, 0
    %s19 = sadd.s32 %s18, 1
    %s20 = scalar_select %p17, %s18, %s19
    %p23 = pneg %p17
    %p24 = scmp.eq.s32.totalorder %s8, 1
    %p25 = por %p23, %p24
    %p26 = scmp.ne.s32.totalorder %s18, %s21
    %p27 = scmp.eq.s32.totalorder %s8, 0
    %p28 = por %p26, %p27
    %p29 = scmp.ne.s32.totalorder %s18, %s21
    %p30 = scmp.eq.s32.totalorder %s13, 1
    %p31 = por %p29, %p30
    %p32 = scmp.ne.s32.totalorder %s21, %s22
    %p33 = scmp.eq.s32.totalorder %s13, 0
    %p34 = por %p32, %p33
    %p35 = scmp.ne.s32.totalorder %s21, %s22
    %p36 = scmp.eq.s32.totalorder %s14, 1
    %p37 = por %p35, %p36
    %p39 = scmp.ne.s32.totalorder %s22, %s38
    %p40 = scmp.eq.s32.totalorder %s14, 0
    %p41 = por %p39, %p40
    %s43 = sadd.s32 %s42, 1
    %p46 = scmp.eq.s32.totalorder %s8, 1
    %p47 = scmp.ne.s32.totalorder %s42, %s44
    %p48 = scmp.eq.s32.totalorder %s8, 0
    %p49 = por %p47, %p48
    %p50 = scmp.ne.s32.totalorder %s42, %s44
    %p51 = scmp.eq.s32.totalorder %s13, 1
    %p52 = por %p50, %p51
    %p53 = scmp.ne.s32.totalorder %s44, %s45
    %p54 = scmp.eq.s32.totalorder %s13, 0
    %p55 = por %p53, %p54
    %p56 = scmp.ne.s32.totalorder %s44, %s45
    %p57 = scmp.eq.s32.totalorder %s14, 1
    %p58 = por %p56, %p57
    %p60 = scmp.ne.s32.totalorder %s45, %s59
    %p61 = scmp.eq.s32.totalorder %s14, 0
    %p62 = por %p60, %p61
    %s63 = ssub.s32 %s8, %s15
    %p64 = scmp.eq.s32.totalorder %s63, 0
    %s66 = sadd.s32 %s65, 1
    %s67 = scalar_select %p64, %s65, %s66
    %p70 = pneg %p64
    %p71 = scmp.eq.s32.totalorder %s8, 1
    %p72 = por %p70, %p71
    %p73 = scmp.ne.s32.totalorder %s65, %s68
    %p74 = scmp.eq.s32.totalorder %s8, 0
    %p75 = por %p73, %p74
    %p76 = scmp.ne.s32.totalorder %s65, %s68
    %p77 = scmp.eq.s32.totalorder %s13, 1
    %p78 = por %p76, %p77
    %p79 = scmp.ne.s32.totalorder %s68, %s69
    %p80 = scmp.eq.s32.totalorder %s13, 0
    %p81 = por %p79, %p80
    %p82 = scmp.ne.s32.totalorder %s68, %s69
    %p83 = scmp.eq.s32.totalorder %s14, 1
    %p84 = por %p82, %p83
    %p86 = scmp.ne.s32.totalorder %s69, %s85
    %p87 = scmp.eq.s32.totalorder %s14, 0
    %p88 = por %p86, %p87
    %p89 = scmp.le.s32.totalorder 1, %s8
    %p90 = scmp.lt.s32.totalorder %s8, 3
    %p91 = pnand %p89, %p90
    %p92 = pneg %p91
    // Predicated region
    $region9: #{tpu_custom_call.1} parent=5 // pred_check
      _
    $region10: #{tpu_custom_call.1} parent=5 // pred_check_branch
      %94 = sbr.rel (%p91) target = $region12
    $region11: #{tpu_custom_call.1} parent=5 // pred_region
      %s95 = ssub.s32 %s8, 1
      // Predicated region
      $region13: #{tpu_custom_call.1} parent=11 // pred_check
        %p96 = pneg %p55
      $region14: #{tpu_custom_call.1} parent=11 // pred_check_branch
        %98 = sbr.rel (%p96) target = $region16
      $region15: #{tpu_custom_call.1} parent=11 // pred_region
        _
      $region16: #{tpu_custom_call.1} parent=11 // pred_fallthru
        _
    $region12: #{tpu_custom_call.1} parent=5 // pred_fallthru
      _
    %p99 = scmp.lt.s32.totalorder %s8, 2
    // Predicated region
    $region17: #{tpu_custom_call.1} parent=5 // pred_check
      %p100 = pneg %p99
    $region18: #{tpu_custom_call.1} parent=5 // pred_check_branch
      %102 = sbr.rel (%p100) target = $region20
    $region19: #{tpu_custom_call.1} parent=5 // pred_region
      // Predicated region
      $region21: #{tpu_custom_call.1} parent=19 // pred_check
        %p103 = pneg %p28
      $region22: #{tpu_custom_call.1} parent=19 // pred_check_branch
        %105 = sbr.rel (%p103) target = $region24
      $region23: #{tpu_custom_call.1} parent=19 // pred_region
        %p106 = scmp.lt.s32.totalorder %s8, 1
        %s107 = scalar_select %p106, %s8, 1
        %s108 = smul.addr %s107, 4
        %s109 = smul.addr %s108, 8
        %s110 = scalar_lea.vmem %s0, %s109
      $region24: #{tpu_custom_call.1} parent=19 // pred_fallthru
        _
    $region20: #{tpu_custom_call.1} parent=5 // pred_fallthru
      _
    %p111 = scmp.le.s32.totalorder 1, %s8
    %p112 = scmp.lt.s32.totalorder %s8, 3
    %p113 = pnand %p111, %p112
    %p114 = pneg %p113
    // Predicated region
    $region25: #{tpu_custom_call.1} parent=5 // pred_check
      _
    $region26: #{tpu_custom_call.1} parent=5 // pred_check_branch
      %116 = sbr.rel (%p113) target = $region28
    $region27: #{tpu_custom_call.1} parent=5 // pred_region
      %s117 = ssub.s32 %s8, 1
      %p118 = scmp.lt.s32.totalorder %s13, 1
      %s119 = scalar_select %p118, %s13, 1
      %s120 = smul.addr %s119, 4
      %s121 = smul.addr %s120, 8
      %s122 = scalar_lea.vmem %s0, %s121
      %p123 = pneg %p34
      %p124 = pneg %p31
      %p125 = pneg %p55
      %p126 = pneg %p52
      %p127 = pneg %p81
      %p128 = pneg %p78
      %p129 = scmp.lt.s32.totalorder %s13, 1
      %s130 = scalar_select %p129, %s13, 1
      %s131 = smul.addr %s130, 4
      %s132 = smul.addr %s131, 8
      %s133 = scalar_lea.vmem %s2, %s132
      %p134 = scmp.lt.s32.totalorder %s13, 1
      %s135 = scalar_select %p134, %s13, 1
      %s136 = smul.addr %s135, 4
      %s137 = smul.addr %s136, 8
      %s138 = scalar_lea.vmem %s0, %s137
      %p139 = scmp.lt.s32.totalorder %s13, 1
      %s140 = scalar_select %p139, %s13, 1
      %s141 = smul.addr %s140, 4
      %s142 = smul.addr %s141, 8
      %s143 = scalar_lea.vmem %s2, %s142
      %v144 = vld [vmem:[%s138] sm:$0xff]
      %v145 = vld [vmem:[%s138 + $0x8] sm:$0xff]
      %v146 = vld [vmem:[%s138 + $0x10] sm:$0xff]
      %v147 = vld [vmem:[%s138 + $0x18] sm:$0xff]
      %v148 = vld [vmem:[%s1] sm:$0xf]
      %v149 = vmul.f32 %v144, %v144
      %v150 = vmul.f32 %v145, %v145
      %v151 = vmul.f32 %v146, %v146
      %v152 = vmul.f32 %v147, %v147
      %vm153 = vcmask 15360
      %v154 = vsel %vm153, %v149, 0.0
      %v155 = vsel %vm153, %v150, 0.0
      %v156 = vadd.f32 %v154, %v155
      %v157 = vsel %vm153, %v151, 0.0
      %v158 = vadd.f32 %v156, %v157
      %v159 = vsel %vm153, %v152, 0.0
      %v160 = vadd.f32 %v158, %v159
      %161 = vadd.xlane.f32.xlu0 %v160
      %v162 = vpop.xlane.xlu0 %161
      %v163 = vrot.slane %v162, 4
      %v164 = vadd.f32 %v162, %v163
      %v165 = vrot.slane %v164, 2
      %v166 = vadd.f32 %v164, %v165
      %v167 = vrot.slane %v166, 1
      %v168 = vadd.f32 %v166, %v167
      %v169 = vrsqrt.pop %v168
      %v170 = vmul.f32 %v168, %v169
      %vm171 = vcmp.eq.f32.partialorder %v168, inf
      %v172 = vsel %vm171, %v168, %v170
      %vm173 = vcmp.eq.f32.partialorder %v168, 0.0
      %v174 = vand.u32 %v168, 2147483648
      %v175 = vsel %vm173, %v174, %v172
      %v176 = vadd.f32 %v175, 1.0
      %v177 = vmax.f32 %v176, 1.0
      %v178 = vmin.f32 %v177, 16.0
      %v179 = vlog2.pop %v178
      %v180 = vmul.f32 %v179, 0.6931472
      %v181 = vrcp.pop 1.3862944
      %v182 = vmul.f32 %v180, %v181
      %v183 = vfloor.f32 %v182
      %v184 = vmul.f32 %v183, 0.5
      %v185 = vfloor.f32 %v184
      %v186 = vmul.f32 %v185, 2.0
      %v187 = vsub.f32 %v183, %v186
      %v188 = vadd.f32 %v187, 0.0
      %v189 = vmul.f32 %v182, 2.0
      %v190 = vfloor.f32 %v189
      %v191 = vmul.f32 %v190, 0.5
      %v192 = vfloor.f32 %v191
      %v193 = vmul.f32 %v192, 2.0
      %v194 = vsub.f32 %v190, %v193
      %v195 = vrcp.pop 2.0
      %v196 = vmul.f32 %v194, %v195
      %v197 = vadd.f32 %v188, %v196
      %v198 = vmul.f32 %v182, 4.0
      %v199 = vfloor.f32 %v198
      %v200 = vmul.f32 %v199, 0.5
      %v201 = vfloor.f32 %v200
      %v202 = vmul.f32 %v201, 2.0
      %v203 = vsub.f32 %v199, %v202
      %v204 = vrcp.pop 4.0
      %v205 = vmul.f32 %v203, %v204
      %v206 = vadd.f32 %v197, %v205
      %v207 = vmul.f32 %v182, 8.0
      %v208 = vfloor.f32 %v207
      %v209 = vmul.f32 %v208, 0.5
      %v210 = vfloor.f32 %v209
      %v211 = vmul.f32 %v210, 2.0
      %v212 = vsub.f32 %v208, %v211
      %v213 = vrcp.pop 8.0
      %v214 = vmul.f32 %v212, %v213
      %v215 = vadd.f32 %v206, %v214
      %v216 = vmul.f32 %v182, 16.0
      %v217 = vfloor.f32 %v216
      %v218 = vmul.f32 %v217, 0.5
      %v219 = vfloor.f32 %v218
      %v220 = vmul.f32 %v219, 2.0
      %v221 = vsub.f32 %v217, %v220
      %v222 = vrcp.pop 16.0
      %v223 = vmul.f32 %v221, %v222
      %v224 = vadd.f32 %v215, %v223
      %v225 = vmul.f32 %v182, 32.0
      %v226 = vfloor.f32 %v225
      %v227 = vmul.f32 %v226, 0.5
      %v228 = vfloor.f32 %v227
      %v229 = vmul.f32 %v228, 2.0
      %v230 = vsub.f32 %v226, %v229
      %v231 = vrcp.pop 32.0
      %v232 = vmul.f32 %v230, %v231
      %v233 = vadd.f32 %v224, %v232
      %v234 = vmul.f32 %v182, 64.0
      %v235 = vfloor.f32 %v234
      %v236 = vmul.f32 %v235, 0.5
      %v237 = vfloor.f32 %v236
      %v238 = vmul.f32 %v237, 2.0
      %v239 = vsub.f32 %v235, %v238
      %v240 = vrcp.pop 64.0
      %v241 = vmul.f32 %v239, %v240
      %v242 = vadd.f32 %v233, %v241
      %v243 = vmul.f32 %v182, 128.0
      %v244 = vfloor.f32 %v243
      %v245 = vmul.f32 %v244, 0.5
      %v246 = vfloor.f32 %v245
      %v247 = vmul.f32 %v246, 2.0
      %v248 = vsub.f32 %v244, %v247
      %v249 = vrcp.pop 128.0
      %v250 = vmul.f32 %v248, %v249
      %v251 = vadd.f32 %v242, %v250
      %v252 = vmul.f32 %v251, 1.3862944
      %v253 = vmul.f32 %v252, 1.442695
      %v254 = vpow.pop %v253
      %v255 = vsub.f32 %v254, 1.0
      %v256 = vrcp.pop %v175
      %v257 = vmul.f32 %v144, %v256
      %v258 = vmul.f32 %v145, %v256
      %v259 = vmul.f32 %v146, %v256
      %v260 = vmul.f32 %v147, %v256
      %262 = vset.pattern.permute.xlu0 0
      %263 = vperm.xlu0 %262, %v257
      %v264 = vpop.permute.xlu0 %263
      %267 = vset.pattern.permute.xlu0 0
      %268 = vperm.xlu0 %267, %v258
      %v269 = vpop.permute.xlu0 %268
      %272 = vset.pattern.permute.xlu0 0
      %273 = vperm.xlu0 %272, %v259
      %v274 = vpop.permute.xlu0 %273
      %277 = vset.pattern.permute.xlu0 0
      %278 = vperm.xlu0 %277, %v260
      %v279 = vpop.permute.xlu0 %278
      %v282 = vlaneseq
      %v283 = vshrl.u32 %v282, 7
      %v284 = vsub.s32 0, %v283
      %v285 = vrot.slane %v148, %v284
      %v286 = vlaneseq
      %v287 = vshrl.u32 %v286, 7
      %v288 = vsub.s32 2, %v287
      %v289 = vrot.slane %v148, %v288
      %v292 = vlaneseq
      %v293 = vshrl.u32 %v292, 7
      %v294 = vsub.s32 0, %v293
      %v295 = vrot.slane %v285, %v294
      %v296 = vlaneseq
      %v297 = vshrl.u32 %v296, 7
      %v298 = vsub.s32 0, %v297
      %v299 = vrot.slane %v289, %v298
      %v300 = vsub.f32 %v264, %v295
      %v301 = vsub.f32 %v264, %v299
      %v302 = vsub.f32 %v269, %v295
      %v303 = vsub.f32 %v269, %v299
      %v304 = vsub.f32 %v274, %v295
      %v305 = vsub.f32 %v274, %v299
      %v306 = vsub.f32 %v279, %v295
      %v307 = vsub.f32 %v279, %v299
      %v308 = vmul.f32 %v300, %v300
      %v309 = vmul.f32 %v301, %v301
      %v310 = vmul.f32 %v302, %v302
      %v311 = vmul.f32 %v303, %v303
      %v312 = vmul.f32 %v304, %v304
      %v313 = vmul.f32 %v305, %v305
      %v314 = vmul.f32 %v306, %v306
      %v315 = vmul.f32 %v307, %v307
      %316 = vset.pattern.permute.xlu0 1
      %317 = vperm.xlu0 %316, %v257
      %v318 = vpop.permute.xlu0 %317
      %320 = vset.pattern.permute.xlu0 1
      %321 = vperm.xlu0 %320, %v258
      %v322 = vpop.permute.xlu0 %321
      %324 = vset.pattern.permute.xlu0 1
      %325 = vperm.xlu0 %324, %v259
      %v326 = vpop.permute.xlu0 %325
      %328 = vset.pattern.permute.xlu0 1
      %329 = vperm.xlu0 %328, %v260
      %v330 = vpop.permute.xlu0 %329
      %v332 = vlaneseq
      %v333 = vshrl.u32 %v332, 7
      %v334 = vsub.s32 1, %v333
      %v335 = vrot.slane %v148, %v334
      %v336 = vlaneseq
      %v337 = vshrl.u32 %v336, 7
      %v338 = vsub.s32 3, %v337
      %v339 = vrot.slane %v148, %v338
      %v342 = vlaneseq
      %v343 = vshrl.u32 %v342, 7
      %v344 = vsub.s32 1, %v343
      %v345 = vrot.slane %v335, %v344
      %v346 = vlaneseq
      %v347 = vshrl.u32 %v346, 7
      %v348 = vsub.s32 1, %v347
      %v349 = vrot.slane %v339, %v348
      %v350 = vsub.f32 %v318, %v345
      %v351 = vsub.f32 %v318, %v349
      %v352 = vsub.f32 %v322, %v345
      %v353 = vsub.f32 %v322, %v349
      %v354 = vsub.f32 %v326, %v345
      %v355 = vsub.f32 %v326, %v349
      %v356 = vsub.f32 %v330, %v345
      %v357 = vsub.f32 %v330, %v349
      %v358 = vmul.f32 %v350, %v350
      %v359 = vmul.f32 %v351, %v351
      %v360 = vmul.f32 %v352, %v352
      %v361 = vmul.f32 %v353, %v353
      %v362 = vmul.f32 %v354, %v354
      %v363 = vmul.f32 %v355, %v355
      %v364 = vmul.f32 %v356, %v356
      %v365 = vmul.f32 %v357, %v357
      %v366 = vadd.f32 %v308, %v358
      %v367 = vadd.f32 %v309, %v359
      %v368 = vadd.f32 %v310, %v360
      %v369 = vadd.f32 %v311, %v361
      %v370 = vadd.f32 %v312, %v362
      %v371 = vadd.f32 %v313, %v363
      %v372 = vadd.f32 %v314, %v364
      %v373 = vadd.f32 %v315, %v365
      %v374 = vmul.f32 %v366, 0.5
      %v375 = vmul.f32 %v367, 0.5
      %v376 = vmul.f32 %v368, 0.5
      %v377 = vmul.f32 %v369, 0.5
      %v378 = vmul.f32 %v370, 0.5
      %v379 = vmul.f32 %v371, 0.5
      %v380 = vmul.f32 %v372, 0.5
      %v381 = vmul.f32 %v373, 0.5
      %v382 = vmin.f32 %v374, %v375
      %383 = vmin.xlane.f32.xlu0 %v382
      %v384 = vpop.xlane.xlu0 %383
      %v385 = vmin.f32 %v376, %v377
      %386 = vmin.xlane.f32.xlu0 %v385
      %v387 = vpop.xlane.xlu0 %386
      %v388 = vmin.f32 %v378, %v379
      %389 = vmin.xlane.f32.xlu0 %v388
      %v390 = vpop.xlane.xlu0 %389
      %v391 = vmin.f32 %v380, %v381
      %392 = vmin.xlane.f32.xlu0 %v391
      %v393 = vpop.xlane.xlu0 %392
      %v394 = vlaneseq
      %v395 = vand.u32 %v394, 127
      %v396 = vadd.s32 %v395, 128
      %v397 = vcvt.s32.f32 %v395
      %v398 = vcvt.s32.f32 %v396
      %vm399 = vcmp.le.f32.partialorder %v374, %v384
      %vm400 = vcmp.le.f32.partialorder %v375, %v384
      %vm401 = vcmp.le.f32.partialorder %v376, %v387
      %vm402 = vcmp.le.f32.partialorder %v377, %v387
      %vm403 = vcmp.le.f32.partialorder %v378, %v390
      %vm404 = vcmp.le.f32.partialorder %v379, %v390
      %vm405 = vcmp.le.f32.partialorder %v380, %v393
      %vm406 = vcmp.le.f32.partialorder %v381, %v393
      %v407 = vsel %vm399, %v397, 256.0
      %v408 = vsel %vm400, %v398, 256.0
      %v409 = vsel %vm401, %v397, 256.0
      %v410 = vsel %vm402, %v398, 256.0
      %v411 = vsel %vm403, %v397, 256.0
      %v412 = vsel %vm404, %v398, 256.0
      %v413 = vsel %vm405, %v397, 256.0
      %v414 = vsel %vm406, %v398, 256.0
      %v415 = vmin.f32 %v407, %v408
      %416 = vmin.xlane.f32.xlu0 %v415
      %v417 = vpop.xlane.xlu0 %416
      %v418 = vmin.f32 %v409, %v410
      %419 = vmin.xlane.f32.xlu0 %v418
      %v420 = vpop.xlane.xlu0 %419
      %v421 = vmin.f32 %v411, %v412
      %422 = vmin.xlane.f32.xlu0 %v421
      %v423 = vpop.xlane.xlu0 %422
      %v424 = vmin.f32 %v413, %v414
      %425 = vmin.xlane.f32.xlu0 %v424
      %v426 = vpop.xlane.xlu0 %425
      %vm427 = vcmp.eq.f32.partialorder %v397, %v417
      %vm428 = vcmp.eq.f32.partialorder %v398, %v417
      %vm429 = vcmp.eq.f32.partialorder %v397, %v420
      %vm430 = vcmp.eq.f32.partialorder %v398, %v420
      %vm431 = vcmp.eq.f32.partialorder %v397, %v423
      %vm432 = vcmp.eq.f32.partialorder %v398, %v423
      %vm433 = vcmp.eq.f32.partialorder %v397, %v426
      %vm434 = vcmp.eq.f32.partialorder %v398, %v426
      %v435 = vsel %vm427, 1, 0
      %v436 = vsel %vm428, 1, 0
      %v437 = vsel %vm429, 1, 0
      %v438 = vsel %vm430, 1, 0
      %v439 = vsel %vm431, 1, 0
      %v440 = vsel %vm432, 1, 0
      %v441 = vsel %vm433, 1, 0
      %v442 = vsel %vm434, 1, 0
      %v443 = vcvt.s32.f32 %v435
      %v444 = vcvt.s32.f32 %v436
      %v445 = vcvt.s32.f32 %v437
      %v446 = vcvt.s32.f32 %v438
      %v447 = vcvt.s32.f32 %v439
      %v448 = vcvt.s32.f32 %v440
      %v449 = vcvt.s32.f32 %v441
      %v450 = vcvt.s32.f32 %v442
      %v451 = vmul.f32 %v443, %v295
      %v452 = vmul.f32 %v444, %v299
      %v453 = vmul.f32 %v445, %v295
      %v454 = vmul.f32 %v446, %v299
      %v455 = vmul.f32 %v447, %v295
      %v456 = vmul.f32 %v448, %v299
      %v457 = vmul.f32 %v449, %v295
      %v458 = vmul.f32 %v450, %v299
      %v459 = vadd.f32 %v451, %v452
      %460 = vadd.xlane.f32.xlu0 %v459
      %v461 = vpop.xlane.xlu0 %460
      %v462 = vadd.f32 %v453, %v454
      %463 = vadd.xlane.f32.xlu0 %v462
      %v464 = vpop.xlane.xlu0 %463
      %v465 = vadd.f32 %v455, %v456
      %466 = vadd.xlane.f32.xlu0 %v465
      %v467 = vpop.xlane.xlu0 %466
      %v468 = vadd.f32 %v457, %v458
      %469 = vadd.xlane.f32.xlu0 %v468
      %v470 = vpop.xlane.xlu0 %469
      %v471 = vmul.f32 %v461, %v255
      %v472 = vmul.f32 %v464, %v255
      %v473 = vmul.f32 %v467, %v255
      %v474 = vmul.f32 %v470, %v255
      %vm475 = vcmask 7168
      %476 = vst.msk [vmem:[%s143] sm:$0xff] %vm475, %v471
      %477 = vst.msk [vmem:[%s143 + $0x8] sm:$0xff] %vm475, %v472
      %478 = vst.msk [vmem:[%s143 + $0x10] sm:$0xff] %vm475, %v473
      %479 = vst.msk [vmem:[%s143 + $0x18] sm:$0xff] %vm475, %v474
      %v480 = vmul.f32 %v443, %v345
      %v481 = vmul.f32 %v444, %v349
      %v482 = vmul.f32 %v445, %v345
      %v483 = vmul.f32 %v446, %v349
      %v484 = vmul.f32 %v447, %v345
      %v485 = vmul.f32 %v448, %v349
      %v486 = vmul.f32 %v449, %v345
      %v487 = vmul.f32 %v450, %v349
      %v488 = vadd.f32 %v480, %v481
      %489 = vadd.xlane.f32.xlu0 %v488
      %v490 = vpop.xlane.xlu0 %489
      %v491 = vadd.f32 %v482, %v483
      %492 = vadd.xlane.f32.xlu0 %v491
      %v493 = vpop.xlane.xlu0 %492
      %v494 = vadd.f32 %v484, %v485
      %495 = vadd.xlane.f32.xlu0 %v494
      %v496 = vpop.xlane.xlu0 %495
      %v497 = vadd.f32 %v486, %v487
      %498 = vadd.xlane.f32.xlu0 %v497
      %v499 = vpop.xlane.xlu0 %498
      %v500 = vmul.f32 %v490, %v255
      %v501 = vmul.f32 %v493, %v255
      %v502 = vmul.f32 %v496, %v255
      %v503 = vmul.f32 %v499, %v255
      %vm504 = vcmask 15368
      %505 = vst.msk [vmem:[%s143] sm:$0xff] %vm504, %v500
      %506 = vst.msk [vmem:[%s143 + $0x8] sm:$0xff] %vm504, %v501
      %507 = vst.msk [vmem:[%s143 + $0x10] sm:$0xff] %vm504, %v502
      %508 = vst.msk [vmem:[%s143 + $0x18] sm:$0xff] %vm504, %v503
      %vm509 = vcmask 23568
      %510 = vst.msk [vmem:[%s143] sm:$0xff] %vm509, %v384
      %511 = vst.msk [vmem:[%s143 + $0x8] sm:$0xff] %vm509, %v387
      %512 = vst.msk [vmem:[%s143 + $0x10] sm:$0xff] %vm509, %v390
      %513 = vst.msk [vmem:[%s143 + $0x18] sm:$0xff] %vm509, %v393
      %p514 = scmp.lt.s32.totalorder %s13, 1
      %s515 = scalar_select %p514, %s13, 1
      %s516 = smul.addr %s515, 4
      %s517 = smul.addr %s516, 8
      %s518 = scalar_lea.vmem %s2, %s517
      // Predicated region
      $region29: #{tpu_custom_call.1} parent=27 // pred_check
        %p519 = pneg %p78
      $region30: #{tpu_custom_call.1} parent=27 // pred_check_branch
        %521 = sbr.rel (%p519) target = $region32
      $region31: #{tpu_custom_call.1} parent=27 // pred_region
        _
      $region32: #{tpu_custom_call.1} parent=27 // pred_fallthru
        _
    $region28: #{tpu_custom_call.1} parent=5 // pred_fallthru
      _
    %p522 = scmp.le.s32.totalorder 2, %s8
    // Predicated region
    $region33: #{tpu_custom_call.1} parent=5 // pred_check
      %p523 = pneg %p522
    $region34: #{tpu_custom_call.1} parent=5 // pred_check_branch
      %525 = sbr.rel (%p523) target = $region36
    $region35: #{tpu_custom_call.1} parent=5 // pred_region
      %s526 = ssub.s32 %s8, 2
      // Predicated region
      $region37: #{tpu_custom_call.1} parent=35 // pred_check
        %p527 = pneg %p84
      $region38: #{tpu_custom_call.1} parent=35 // pred_check_branch
        %529 = sbr.rel (%p527) target = $region40
      $region39: #{tpu_custom_call.1} parent=35 // pred_region
        %p530 = scmp.lt.s32.totalorder %s14, 1
        %s531 = scalar_select %p530, %s14, 1
        %s532 = smul.addr %s531, 4
        %s533 = smul.addr %s532, 8
        %s534 = scalar_lea.vmem %s2, %s533
      $region40: #{tpu_custom_call.1} parent=35 // pred_fallthru
        _
    $region36: #{tpu_custom_call.1} parent=5 // pred_fallthru
      _
  $region6: #{tpu_custom_call.1} parent=0 // loop_footer
    %s12 = sadd.s32 1, %s8
  $region7: #{tpu_custom_call.1} parent=0 // loop_footer_branch
    %7 = sbr.rel target = $region3
  $region8: #{tpu_custom_call.1} parent=0 // loop_exit
    _

</llo_original>
